<compile_context>
chip_gen: v5e
topology: v5e:2x2
jax: 0.10.0
libtpu: 0.0.40
codegen_flags: <defaults>
</compile_context>

<pallas_src>
import functools

import jax
import jax.numpy as jnp
from jax import lax
from jax.experimental import pallas as pl
from jax.experimental.pallas import tpu as pltpu

EPS = 1e-12  # matches F.normalize's default eps (clamp on the L2 norm)


def _avsim_kernel(v_ref, a_ref, o_ref):
    # v_ref, a_ref: (tile_rows, C) blocks in VMEM; o_ref: (tile_rows, 1).
    v = v_ref[...].astype(jnp.float32)
    a = a_ref[...].astype(jnp.float32)

    # Row-wise reductions over the feature axis (VPU multiplies + XLU reduce).
    dot = jnp.sum(v * a, axis=-1, keepdims=True)
    v_sq = jnp.sum(v * v, axis=-1, keepdims=True)
    a_sq = jnp.sum(a * a, axis=-1, keepdims=True)

    # cos = dot * rsqrt(max(|v|^2, eps^2)) * rsqrt(max(|a|^2, eps^2))
    # == sum(v/max(||v||,eps) * a/max(||a||,eps)), i.e. exactly F.normalize + dot.
    inv_v = lax.rsqrt(jnp.maximum(v_sq, EPS * EPS))
    inv_a = lax.rsqrt(jnp.maximum(a_sq, EPS * EPS))

    # Ragged boundary blocks compute on Pallas-padded rows; results there may be
    # garbage but are masked on store / sliced off in the wrapper.
    o_ref[...] = (dot * inv_v * inv_a).astype(o_ref.dtype)


@functools.lru_cache(maxsize=None)
def _vmem_budgets():
    """(input-block VMEM budget, scoped-vmem-limit cap) for this chip generation."""
    phys = 64 * 1024 * 1024  # conservative default: v7x has 64 MiB per TensorCore
    try:
        info = pltpu.get_tpu_info()
        phys = int(getattr(info, "vmem_capacity_bytes", phys) or phys)
    except Exception:
        pass  # not on TPU / old runtime: keep the safe 64 MiB assumption
    if phys >= 128 * 1024 * 1024:  # v5e / v6e: use the larger VMEM for bigger tiles
        return 56 * 1024 * 1024, 100 * 1024 * 1024
    return 26 * 1024 * 1024, 56 * 1024 * 1024  # v7x-class (64 MiB physical)


def _per_row_vmem_bytes(feat, itemsize):
    # 2 inputs x 2 pipeline buffers in the input dtype
    # + f32 working copies of v and a (in-kernel upcast / loaded values)
    # + ~1 row of f32 elementwise-product temporaries.
    return 2 * 2 * feat * itemsize + 2 * feat * 4 + feat * 4


def _pick_tile_rows(n_rows, per_row_bytes, itemsize, requested, vmem_input_budget):
    """Row tile: as large as the VMEM budget allows, but keeping >=~8 grid steps
    for big problems so megacore sharding / pipelining stay effective."""
    sublane = max(8, 32 // max(1, itemsize))  # 8 for f32, 16 for bf16, 32 for int8
    budget_rows = max(sublane, vmem_input_budget // per_row_bytes)

    # Floor that keeps per-step DMA well above the ~0.35us fixed grid overhead.
    min_rows = 4096
    tile = min(budget_rows, max(pl.cdiv(n_rows, 8), min_rows))
    if requested is not None:
        tile = min(tile, int(requested))
    tile = max(tile, sublane)

    if n_rows <= tile:
        return n_rows  # single block == full dim (always legal, any alignment)
    tile -= tile % sublane  # rows map to sublanes: round to sublane multiple
    return max(tile, sublane)


@functools.partial(jax.jit, static_argnames=("tile_rows", "vmem_input_budget"))
def av_similarity(v_fea, a_fea, *, tile_rows=None, vmem_input_budget=None):
    """Pallas equivalent of AVSimilarity.forward.

    v_fea, a_fea: [B, T, C] -> returns [B, T] cosine similarity (float32).
    tile_rows / vmem_input_budget are optional manual overrides for tuning.
    """
    assert v_fea.shape == a_fea.shape, (v_fea.shape, a_fea.shape)
    B, T, C = v_fea.shape
    N = B * T

    v2 = v_fea.reshape(N, C)  # row-major views; no data movement, no padding copies
    a2 = a_fea.reshape(N, C)

    itemsize = max(jnp.dtype(v_fea.dtype).itemsize, jnp.dtype(a_fea.dtype).itemsize)
    auto_budget, limit_cap = _vmem_budgets()
    input_budget = auto_budget if vmem_input_budget is None else int(vmem_input_budget)

    per_row = _per_row_vmem_bytes(C, itemsize)
    tile = _pick_tile_rows(N, per_row, itemsize, tile_rows, input_budget)
    grid = (pl.cdiv(N, tile),)

    # Scoped-VMEM limit: actual footprint + generous headroom, floored at 32 MiB,
    # capped below this generation's physical VMEM.
    vmem_limit = int(min(limit_cap, max(32 << 20, tile * per_row + (16 << 20))))

    out = pl.pallas_call(
        _avsim_kernel,
        out_shape=jax.ShapeDtypeStruct((N, 1), jnp.float32),
        grid_spec=pltpu.PrefetchScalarGridSpec(
            num_scalar_prefetch=0,
            grid=grid,
            in_specs=[
                pl.BlockSpec((tile, C), lambda i: (i, 0)),
                pl.BlockSpec((tile, C), lambda i: (i, 0)),
            ],
            out_specs=pl.BlockSpec((tile, 1), lambda i: (i, 0)),
        ),
        compiler_params=pltpu.CompilerParams(
            dimension_semantics=("parallel",),  # megacore-shardable row loop
            vmem_limit_bytes=vmem_limit,
        ),
    )(v2, a2)

    # Output is f32 even for bf16 inputs (accumulation dtype); intentional
    # divergence from PyTorch's dtype passthrough for half-precision inputs.
    return out.reshape(B, T)


def _reference(v_fea, a_fea):
    """Pure-JAX reference mirroring the PyTorch forward (F.normalize + dot)."""
    v = v_fea.astype(jnp.float32)
    a = a_fea.astype(jnp.float32)
    vn = v / jnp.maximum(jnp.linalg.norm(v, axis=-1, keepdims=True), EPS)
    an = a / jnp.maximum(jnp.linalg.norm(a, axis=-1, keepdims=True), EPS)
    return jnp.sum(vn * an, axis=-1)


if __name__ == "__main__":
    # AVSimilarity has no learnable parameters (nothing to initialize).
    key = jax.random.PRNGKey(0)
    kv, ka = jax.random.split(key)

    # (a) f32, forced small tile: N = 200 rows, tile_rows=128 -> 2-step ragged grid.
    B, T, C = 2, 100, 64
    v = jax.random.normal(kv, (B, T, C), dtype=jnp.float32)
    a = jax.random.normal(ka, (B, T, C), dtype=jnp.float32)
    out = jax.block_until_ready(av_similarity(v, a, tile_rows=128))
    assert out.shape == (B, T)
    assert jnp.allclose(out, _reference(v, a), atol=1e-5, rtol=1e-5)

    # (b) f32, N (=15) smaller than a tile and not a multiple of 8 (full-array block).
    B2, T2, C2 = 3, 5, 32
    v_s = jax.random.normal(kv, (B2, T2, C2), dtype=jnp.float32)
    a_s = jax.random.normal(ka, (B2, T2, C2), dtype=jnp.float32)
    out_s = jax.block_until_ready(av_similarity(v_s, a_s))
    assert out_s.shape == (B2, T2)
    assert jnp.allclose(out_s, _reference(v_s, a_s), atol=1e-5, rtol=1e-5)

    # (c) bf16 inputs stay bf16 in HBM and are upcast inside the kernel.
    B3, T3, C3 = 2, 64, 128
    v_h = jax.random.normal(kv, (B3, T3, C3), dtype=jnp.bfloat16)
    a_h = jax.random.normal(ka, (B3, T3, C3), dtype=jnp.bfloat16)
    out_h = jax.block_until_ready(av_similarity(v_h, a_h))
    assert out_h.shape == (B3, T3)
    assert jnp.allclose(out_h, _reference(v_h, a_h), atol=1e-4, rtol=1e-4)

    # (d) f32, auto tile selection: N = 16384 rows -> multi-step grid via the
    #     megacore/min-rows cap (tile 4096, 4 grid steps).
    B4, T4, C4 = 8, 2048, 64
    v_l = jax.random.normal(kv, (B4, T4, C4), dtype=jnp.float32)
    a_l = jax.random.normal(ka, (B4, T4, C4), dtype=jnp.float32)
    out_l = jax.block_until_ready(av_similarity(v_l, a_l))
    assert out_l.shape == (B4, T4)
    assert jnp.allclose(out_l, _reference(v_l, a_l), atol=1e-5, rtol=1e-5)

    print("KERNEL_OK")
</pallas_src>

<mosaic_0001>
module attributes {stable_mosaic.version = 11 : i64} {
  func.func @_avsim_kernel(%arg0: i32, %arg1: memref<128x64xf32, #tpu.memory_space<vmem>>, %arg2: memref<128x64xf32, #tpu.memory_space<vmem>>, %arg3: memref<128x1xf32, #tpu.memory_space<vmem>>) attributes {dimension_semantics = [#tpu.dimension_semantics<parallel>], iteration_bounds = array<i64: 2>, scalar_prefetch = 0 : i64, scratch_operands = 0 : i64, tpu.core_type = #tpu.core_type<tc>, window_params = [{transform_indices = @transform_0, window_bounds = array<i64: 128, 64>}, {transform_indices = @transform_1, window_bounds = array<i64: 128, 64>}, {transform_indices = @transform_2, window_bounds = array<i64: 128, 1>}]} {
    %c0 = arith.constant 0 : index
    %c0_0 = arith.constant 0 : index
    %0 = vector.load %arg1[%c0, %c0_0] : memref<128x64xf32, #tpu.memory_space<vmem>>, vector<128x64xf32>
    %c0_1 = arith.constant 0 : index
    %c0_2 = arith.constant 0 : index
    %1 = vector.load %arg2[%c0_1, %c0_2] : memref<128x64xf32, #tpu.memory_space<vmem>>, vector<128x64xf32>
    %2 = arith.mulf %0, %1 : vector<128x64xf32>
    %cst = arith.constant dense<0.000000e+00> : vector<128xf32>
    %3 = vector.multi_reduction <add>, %2, %cst [1] : vector<128x64xf32> to vector<128xf32>
    %4 = vector.shape_cast %3 : vector<128xf32> to vector<128x1xf32>
    %5 = arith.mulf %0, %0 : vector<128x64xf32>
    %cst_3 = arith.constant dense<0.000000e+00> : vector<128xf32>
    %6 = vector.multi_reduction <add>, %5, %cst_3 [1] : vector<128x64xf32> to vector<128xf32>
    %7 = vector.shape_cast %6 : vector<128xf32> to vector<128x1xf32>
    %8 = arith.mulf %1, %1 : vector<128x64xf32>
    %cst_4 = arith.constant dense<0.000000e+00> : vector<128xf32>
    %9 = vector.multi_reduction <add>, %8, %cst_4 [1] : vector<128x64xf32> to vector<128xf32>
    %10 = vector.shape_cast %9 : vector<128xf32> to vector<128x1xf32>
    %cst_5 = arith.constant 1.000000e-24 : f32
    %11 = vector.broadcast %cst_5 : f32 to vector<128x1xf32>
    %12 = arith.maximumf %7, %11 : vector<128x1xf32>
    %13 = math.rsqrt %12 : vector<128x1xf32>
    %cst_6 = arith.constant 1.000000e-24 : f32
    %14 = vector.broadcast %cst_6 : f32 to vector<128x1xf32>
    %15 = arith.maximumf %10, %14 : vector<128x1xf32>
    %16 = math.rsqrt %15 : vector<128x1xf32>
    %17 = arith.mulf %4, %13 : vector<128x1xf32>
    %18 = arith.mulf %17, %16 : vector<128x1xf32>
    %c0_7 = arith.constant 0 : index
    %c0_8 = arith.constant 0 : index
    %19 = vector.load %arg3[%c0_7, %c0_8] : memref<128x1xf32, #tpu.memory_space<vmem>>, vector<128x1xf32>
    tpu.vector_store %arg3[%c0_7, %c0_8], %18 {strides = array<i32>} : memref<128x1xf32, #tpu.memory_space<vmem>>, vector<128x1xf32>,
    return
  }
  func.func @transform_0(%arg0: i32) -> (i32, i32) {
    %c0_i32 = arith.constant 0 : i32
    %c0_i32_0 = arith.constant 0 : i32
    return %arg0, %c0_i32 : i32, i32
  }
  func.func @transform_1(%arg0: i32) -> (i32, i32) {
    %c0_i32 = arith.constant 0 : i32
    %c0_i32_0 = arith.constant 0 : i32
    return %arg0, %c0_i32 : i32, i32
  }
  func.func @transform_2(%arg0: i32) -> (i32, i32) {
    %c0_i32 = arith.constant 0 : i32
    %c0_i32_0 = arith.constant 0 : i32
    return %arg0, %c0_i32 : i32, i32
  }
}

</mosaic_0001>

<llo_original>
// kernel: av_similarity.1
$region0: #{av_similarity.1}
  #allocation0 [shape = 'u32[]', space=smem, size = 0x4, offset = 0x4, fixed_abs, tag = 'smem constant byte address 0x4 - core index']
  #allocation1 [shape = 'u32[72,128]{1,0:T(1,128)}', space=vmem, size = 0x9000, scoped, tag = 'internal scratch']
  %s0 = inlined_call_operand.vmem [shape: f32[200,64], index: 0, kind: input, shape index: {}]
  %s1 = inlined_call_operand.vmem [shape: f32[200,64], index: 1, kind: input, shape index: {}]
  %s2 = inlined_call_operand.vmem [shape: f32[200,1], index: 2, kind: output, shape index: {}]
  %s3 = sld [smem:[#allocation0]]
  $region89: #{av_similarity.1} parent=0
    _
  %s5 = ssub.s32 1, %s3
  %s6 = scalar_select 0, %s5, %s3
  $region1: #{av_similarity.1} parent=0
    #allocation2 [shape = 'u8[131072]{0}', space=vmem, size = 0x20000, scoped, tag = 'output window, operand 0']
    loop: start=0, step=1, limit=4
    $region2: #{av_similarity.1} parent=1 // loop_pre_header
      _
    $region3: #{av_similarity.1} parent=1 // loop_header
      %s8 = sphi 0, %s12
      %p9 = scmp.ge.s32.totalorder %s8, 4
      %s18 = sphi 0, %s20
      %s21 = sphi 0, %s18
      %s22 = sphi 0, %s21
      %s38 = sphi 0, %s22
      %s44 = sphi 0, %s46
      %s47 = sphi 0, %s44
      %s48 = sphi 0, %s47
      %s64 = sphi 0, %s48
      %s70 = sphi 0, %s72
      %s73 = sphi 0, %s70
      %s74 = sphi 0, %s73
      %s90 = sphi 0, %s74
    $region4: #{av_similarity.1} parent=1 // loop_header_branch
      %11 = sbr.rel (%p9) target = $region8
    $region5: #{av_similarity.1} parent=1 // loop_body
      %s13 = ssub.s32 %s8, 1
      %s14 = ssub.s32 %s8, 2
      %s15 = sadd.s32 %s8, 1
      %s16 = ssub.s32 %s8, %s15
      %p17 = scmp.eq.s32.totalorder %s16, 0
      %s19 = sadd.s32 %s18, 1
      %s20 = scalar_select %p17, %s18, %s19
      %p23 = pneg %p17
      %p24 = scmp.eq.s32.totalorder %s8, 1
      %p25 = por %p23, %p24
      %p26 = scmp.ne.s32.totalorder %s18, %s21
      %p27 = scmp.eq.s32.totalorder %s8, 0
      %p28 = por %p26, %p27
      %p29 = scmp.ne.s32.totalorder %s18, %s21
      %p30 = scmp.eq.s32.totalorder %s13, 1
      %p31 = por %p29, %p30
      %p32 = scmp.ne.s32.totalorder %s21, %s22
      %p33 = scmp.eq.s32.totalorder %s13, 0
      %p34 = por %p32, %p33
      %p35 = scmp.ne.s32.totalorder %s21, %s22
      %p36 = scmp.eq.s32.totalorder %s14, 1
      %p37 = por %p35, %p36
      %p39 = scmp.ne.s32.totalorder %s22, %s38
      %p40 = scmp.eq.s32.totalorder %s14, 0
      %p41 = por %p39, %p40
      %s42 = ssub.s32 %s8, %s15
      %p43 = scmp.eq.s32.totalorder %s42, 0
      %s45 = sadd.s32 %s44, 1
      %s46 = scalar_select %p43, %s44, %s45
      %p49 = pneg %p43
      %p50 = scmp.eq.s32.totalorder %s8, 1
      %p51 = por %p49, %p50
      %p52 = scmp.ne.s32.totalorder %s44, %s47
      %p53 = scmp.eq.s32.totalorder %s8, 0
      %p54 = por %p52, %p53
      %p55 = scmp.ne.s32.totalorder %s44, %s47
      %p56 = scmp.eq.s32.totalorder %s13, 1
      %p57 = por %p55, %p56
      %p58 = scmp.ne.s32.totalorder %s47, %s48
      %p59 = scmp.eq.s32.totalorder %s13, 0
      %p60 = por %p58, %p59
      %p61 = scmp.ne.s32.totalorder %s47, %s48
      %p62 = scmp.eq.s32.totalorder %s14, 1
      %p63 = por %p61, %p62
      %p65 = scmp.ne.s32.totalorder %s48, %s64
      %p66 = scmp.eq.s32.totalorder %s14, 0
      %p67 = por %p65, %p66
      %s68 = ssub.s32 %s8, %s15
      %p69 = scmp.eq.s32.totalorder %s68, 0
      %s71 = sadd.s32 %s70, 1
      %s72 = scalar_select %p69, %s70, %s71
      %p75 = pneg %p69
      %p76 = scmp.eq.s32.totalorder %s8, 1
      %p77 = por %p75, %p76
      %p78 = scmp.ne.s32.totalorder %s70, %s73
      %p79 = scmp.eq.s32.totalorder %s8, 0
      %p80 = por %p78, %p79
      %p81 = scmp.ne.s32.totalorder %s70, %s73
      %p82 = scmp.eq.s32.totalorder %s13, 1
      %p83 = por %p81, %p82
      %p84 = scmp.ne.s32.totalorder %s73, %s74
      %p85 = scmp.eq.s32.totalorder %s13, 0
      %p86 = por %p84, %p85
      %p87 = scmp.ne.s32.totalorder %s73, %s74
      %p88 = scmp.eq.s32.totalorder %s14, 1
      %p89 = por %p87, %p88
      %p91 = scmp.ne.s32.totalorder %s74, %s90
      %p92 = scmp.eq.s32.totalorder %s14, 0
      %p93 = por %p91, %p92
      %p94 = scmp.le.s32.totalorder 1, %s8
      %p95 = scmp.lt.s32.totalorder %s8, 3
      %p96 = pnand %p94, %p95
      %p97 = pneg %p96
      // Predicated region
      $region9: #{av_similarity.1} parent=5 // pred_check
        _
      $region10: #{av_similarity.1} parent=5 // pred_check_branch
        %99 = sbr.rel (%p96) target = $region12
      $region11: #{av_similarity.1} parent=5 // pred_region
        %s100 = ssub.s32 %s8, 1
      $region12: #{av_similarity.1} parent=5 // pred_fallthru
        _
      %p101 = scmp.lt.s32.totalorder %s8, 2
      // Predicated region
      $region13: #{av_similarity.1} parent=5 // pred_check
        %p102 = pneg %p101
      $region14: #{av_similarity.1} parent=5 // pred_check_branch
        %104 = sbr.rel (%p102) target = $region16
      $region15: #{av_similarity.1} parent=5 // pred_region
        // Predicated region
        $region17: #{av_similarity.1} parent=15 // pred_check
          %p105 = pneg %p28
        $region18: #{av_similarity.1} parent=15 // pred_check_branch
          %107 = sbr.rel (%p105) target = $region20
        $region19: #{av_similarity.1} parent=15 // pred_region
          %s108 = smul.u32 16, %s8
          %s109 = ssub.s32 25, %s108
          %p110 = scmp.lt.s32.totalorder %s109, 16
          %s111 = scalar_select %p110, %s109, 16
          %s112 = smul.u32 8, %s111
          %p113 = scmp.lt.s32.totalorder %s108, 24
          %s114 = scalar_select %p113, %s108, 24
          %s115 = smul.addr %s114, 8
          %s116 = scalar_lea.vmem %s0, %s115
          %s117 = smul.u32 16, %s8
          %s118 = ssub.s32 25, %s117
          %p119 = scmp.lt.s32.totalorder %s118, 16
          %s120 = scalar_select %p119, %s118, 16
          %s121 = smul.u32 8, %s120
        $region20: #{av_similarity.1} parent=15 // pred_fallthru
          _
        // Predicated region
        $region21: #{av_similarity.1} parent=15 // pred_check
          %p122 = pneg %p54
        $region22: #{av_similarity.1} parent=15 // pred_check_branch
          %124 = sbr.rel (%p122) target = $region24
        $region23: #{av_similarity.1} parent=15 // pred_region
          %s125 = smul.u32 16, %s8
          %s126 = ssub.s32 25, %s125
          %p127 = scmp.lt.s32.totalorder %s126, 16
          %s128 = scalar_select %p127, %s126, 16
          %s129 = smul.u32 8, %s128
          %p130 = scmp.lt.s32.totalorder %s125, 24
          %s131 = scalar_select %p130, %s125, 24
          %s132 = smul.addr %s131, 8
          %s133 = scalar_lea.vmem %s1, %s132
          %s134 = smul.u32 16, %s8
          %s135 = ssub.s32 25, %s134
          %p136 = scmp.lt.s32.totalorder %s135, 16
          %s137 = scalar_select %p136, %s135, 16
          %s138 = smul.u32 8, %s137
        $region24: #{av_similarity.1} parent=15 // pred_fallthru
          _
      $region16: #{av_similarity.1} parent=5 // pred_fallthru
        _
      %p139 = scmp.le.s32.totalorder 1, %s8
      %p140 = scmp.lt.s32.totalorder %s8, 3
      %p141 = pnand %p139, %p140
      %p142 = pneg %p141
      // Predicated region
      $region25: #{av_similarity.1} parent=5 // pred_check
        _
      $region26: #{av_similarity.1} parent=5 // pred_check_branch
        %144 = sbr.rel (%p141) target = $region28
      $region27: #{av_similarity.1} parent=5 // pred_region
        %s145 = ssub.s32 %s8, 1
        %s146 = smul.u32 16, %s13
        %s147 = ssub.s32 25, %s146
        %p148 = scmp.lt.s32.totalorder %s147, 16
        %s149 = scalar_select %p148, %s147, 16
        %s150 = smul.u32 8, %s149
        %p151 = scmp.lt.s32.totalorder %s146, 24
        %s152 = scalar_select %p151, %s146, 24
        %s153 = smul.addr %s152, 8
        %s154 = scalar_lea.vmem %s0, %s153
        %p155 = pneg %p34
        %p156 = pneg %p31
        %s157 = smul.u32 16, %s13
        %s158 = ssub.s32 25, %s157
        %p159 = scmp.lt.s32.totalorder %s158, 16
        %s160 = scalar_select %p159, %s158, 16
        %s161 = smul.u32 8, %s160
        %p162 = scmp.lt.s32.totalorder %s157, 24
        %s163 = scalar_select %p162, %s157, 24
        %s164 = smul.addr %s163, 8
        %s165 = scalar_lea.vmem %s1, %s164
        %p166 = pneg %p60
        %p167 = pneg %p57
        %p168 = pneg %p86
        %p169 = pneg %p83
        %s170 = sand.u32 %s73, 1
        %s171 = sand.u32 %s73, 1
        %s172 = smul.addr %s171, 128
        %s173 = scalar_lea.vmem [#allocation2], %s172
        %s174 = smul.u32 16, %s13
        %s175 = ssub.s32 25, %s174
        %p176 = scmp.lt.s32.totalorder %s175, 16
        %s177 = scalar_select %p176, %s175, 16
        %s178 = smul.u32 8, %s177
        %p179 = scmp.lt.s32.totalorder %s174, 24
        %s180 = scalar_select %p179, %s174, 24
        %s181 = smul.addr %s180, 8
        %s182 = scalar_lea.vmem %s0, %s181
        %s183 = smul.u32 16, %s13
        %s184 = ssub.s32 25, %s183
        %p185 = scmp.lt.s32.totalorder %s184, 16
        %s186 = scalar_select %p185, %s184, 16
        %s187 = smul.u32 8, %s186
        %s188 = smul.u32 16, %s13
        %s189 = ssub.s32 25, %s188
        %p190 = scmp.lt.s32.totalorder %s189, 16
        %s191 = scalar_select %p190, %s189, 16
        %s192 = smul.u32 8, %s191
        %p193 = scmp.lt.s32.totalorder %s188, 24
        %s194 = scalar_select %p193, %s188, 24
        %s195 = smul.addr %s194, 8
        %s196 = scalar_lea.vmem %s1, %s195
        %s197 = smul.u32 16, %s13
        %s198 = ssub.s32 25, %s197
        %p199 = scmp.lt.s32.totalorder %s198, 16
        %s200 = scalar_select %p199, %s198, 16
        %s201 = smul.u32 8, %s200
        %s202 = smul.u32 16, %s13
        %s203 = ssub.s32 25, %s202
        %p204 = scmp.lt.s32.totalorder %s203, 16
        %s205 = scalar_select %p204, %s203, 16
        %s206 = smul.u32 8, %s205
        %v207 = vld [vmem:[%s182] sm:$0xff]
        %v208 = vld [vmem:[%s182 + $0x8] sm:$0xff]
        %v209 = vld [vmem:[%s182 + $0x10] sm:$0xff]
        %v210 = vld [vmem:[%s182 + $0x18] sm:$0xff]
        %v211 = vld [vmem:[%s182 + $0x20] sm:$0xff]
        %v212 = vld [vmem:[%s182 + $0x28] sm:$0xff]
        %v213 = vld [vmem:[%s182 + $0x30] sm:$0xff]
        %v214 = vld [vmem:[%s182 + $0x38] sm:$0xff]
        %v215 = vld [vmem:[%s182 + $0x40] sm:$0xff]
        %v216 = vld [vmem:[%s182 + $0x48] sm:$0xff]
        %v217 = vld [vmem:[%s182 + $0x50] sm:$0xff]
        %v218 = vld [vmem:[%s182 + $0x58] sm:$0xff]
        %v219 = vld [vmem:[%s182 + $0x60] sm:$0xff]
        %v220 = vld [vmem:[%s182 + $0x68] sm:$0xff]
        %v221 = vld [vmem:[%s182 + $0x70] sm:$0xff]
        %v222 = vld [vmem:[%s182 + $0x78] sm:$0xff]
        %v223 = vld [vmem:[%s196] sm:$0xff]
        %v224 = vld [vmem:[%s196 + $0x8] sm:$0xff]
        %v225 = vld [vmem:[%s196 + $0x10] sm:$0xff]
        %v226 = vld [vmem:[%s196 + $0x18] sm:$0xff]
        %v227 = vld [vmem:[%s196 + $0x20] sm:$0xff]
        %v228 = vld [vmem:[%s196 + $0x28] sm:$0xff]
        %v229 = vld [vmem:[%s196 + $0x30] sm:$0xff]
        %v230 = vld [vmem:[%s196 + $0x38] sm:$0xff]
        %v231 = vld [vmem:[%s196 + $0x40] sm:$0xff]
        %v232 = vld [vmem:[%s196 + $0x48] sm:$0xff]
        %v233 = vld [vmem:[%s196 + $0x50] sm:$0xff]
        %v234 = vld [vmem:[%s196 + $0x58] sm:$0xff]
        %v235 = vld [vmem:[%s196 + $0x60] sm:$0xff]
        %v236 = vld [vmem:[%s196 + $0x68] sm:$0xff]
        %v237 = vld [vmem:[%s196 + $0x70] sm:$0xff]
        %v238 = vld [vmem:[%s196 + $0x78] sm:$0xff]
        %v239 = vmul.f32 %v207, %v223
        %v240 = vmul.f32 %v208, %v224
        %v241 = vmul.f32 %v209, %v225
        %v242 = vmul.f32 %v210, %v226
        %v243 = vmul.f32 %v211, %v227
        %v244 = vmul.f32 %v212, %v228
        %v245 = vmul.f32 %v213, %v229
        %v246 = vmul.f32 %v214, %v230
        %v247 = vmul.f32 %v215, %v231
        %v248 = vmul.f32 %v216, %v232
        %v249 = vmul.f32 %v217, %v233
        %v250 = vmul.f32 %v218, %v234
        %v251 = vmul.f32 %v219, %v235
        %v252 = vmul.f32 %v220, %v236
        %v253 = vmul.f32 %v221, %v237
        %v254 = vmul.f32 %v222, %v238
        %vm255 = vcmask 523264
        %v256 = vsel %vm255, %v239, 0.0
        %257 = vadd.xlane.f32.xlu0 %v256
        %v258 = vpop.xlane.xlu0 %257
        %v259 = vsel %vm255, %v240, 0.0
        %260 = vadd.xlane.f32.xlu0 %v259
        %v261 = vpop.xlane.xlu0 %260
        %v262 = vsel %vm255, %v241, 0.0
        %263 = vadd.xlane.f32.xlu0 %v262
        %v264 = vpop.xlane.xlu0 %263
        %v265 = vsel %vm255, %v242, 0.0
        %266 = vadd.xlane.f32.xlu0 %v265
        %v267 = vpop.xlane.xlu0 %266
        %v268 = vsel %vm255, %v243, 0.0
        %269 = vadd.xlane.f32.xlu0 %v268
        %v270 = vpop.xlane.xlu0 %269
        %v271 = vsel %vm255, %v244, 0.0
        %272 = vadd.xlane.f32.xlu0 %v271
        %v273 = vpop.xlane.xlu0 %272
        %v274 = vsel %vm255, %v245, 0.0
        %275 = vadd.xlane.f32.xlu0 %v274
        %v276 = vpop.xlane.xlu0 %275
        %v277 = vsel %vm255, %v246, 0.0
        %278 = vadd.xlane.f32.xlu0 %v277
        %v279 = vpop.xlane.xlu0 %278
        %v280 = vsel %vm255, %v247, 0.0
        %281 = vadd.xlane.f32.xlu0 %v280
        %v282 = vpop.xlane.xlu0 %281
        %v283 = vsel %vm255, %v248, 0.0
        %284 = vadd.xlane.f32.xlu0 %v283
        %v285 = vpop.xlane.xlu0 %284
        %v286 = vsel %vm255, %v249, 0.0
        %287 = vadd.xlane.f32.xlu0 %v286
        %v288 = vpop.xlane.xlu0 %287
        %v289 = vsel %vm255, %v250, 0.0
        %290 = vadd.xlane.f32.xlu0 %v289
        %v291 = vpop.xlane.xlu0 %290
        %v292 = vsel %vm255, %v251, 0.0
        %293 = vadd.xlane.f32.xlu0 %v292
        %v294 = vpop.xlane.xlu0 %293
        %v295 = vsel %vm255, %v252, 0.0
        %296 = vadd.xlane.f32.xlu0 %v295
        %v297 = vpop.xlane.xlu0 %296
        %v298 = vsel %vm255, %v253, 0.0
        %299 = vadd.xlane.f32.xlu0 %v298
        %v300 = vpop.xlane.xlu0 %299
        %v301 = vsel %vm255, %v254, 0.0
        %302 = vadd.xlane.f32.xlu0 %v301
        %v303 = vpop.xlane.xlu0 %302
        %v304 = vmul.f32 %v207, %v207
        %v305 = vmul.f32 %v208, %v208
        %v306 = vmul.f32 %v209, %v209
        %v307 = vmul.f32 %v210, %v210
        %v308 = vmul.f32 %v211, %v211
        %v309 = vmul.f32 %v212, %v212
        %v310 = vmul.f32 %v213, %v213
        %v311 = vmul.f32 %v214, %v214
        %v312 = vmul.f32 %v215, %v215
        %v313 = vmul.f32 %v216, %v216
        %v314 = vmul.f32 %v217, %v217
        %v315 = vmul.f32 %v218, %v218
        %v316 = vmul.f32 %v219, %v219
        %v317 = vmul.f32 %v220, %v220
        %v318 = vmul.f32 %v221, %v221
        %v319 = vmul.f32 %v222, %v222
        %v320 = vsel %vm255, %v304, 0.0
        %321 = vadd.xlane.f32.xlu0 %v320
        %v322 = vpop.xlane.xlu0 %321
        %v323 = vsel %vm255, %v305, 0.0
        %324 = vadd.xlane.f32.xlu0 %v323
        %v325 = vpop.xlane.xlu0 %324
        %v326 = vsel %vm255, %v306, 0.0
        %327 = vadd.xlane.f32.xlu0 %v326
        %v328 = vpop.xlane.xlu0 %327
        %v329 = vsel %vm255, %v307, 0.0
        %330 = vadd.xlane.f32.xlu0 %v329
        %v331 = vpop.xlane.xlu0 %330
        %v332 = vsel %vm255, %v308, 0.0
        %333 = vadd.xlane.f32.xlu0 %v332
        %v334 = vpop.xlane.xlu0 %333
        %v335 = vsel %vm255, %v309, 0.0
        %336 = vadd.xlane.f32.xlu0 %v335
        %v337 = vpop.xlane.xlu0 %336
        %v338 = vsel %vm255, %v310, 0.0
        %339 = vadd.xlane.f32.xlu0 %v338
        %v340 = vpop.xlane.xlu0 %339
        %v341 = vsel %vm255, %v311, 0.0
        %342 = vadd.xlane.f32.xlu0 %v341
        %v343 = vpop.xlane.xlu0 %342
        %v344 = vsel %vm255, %v312, 0.0
        %345 = vadd.xlane.f32.xlu0 %v344
        %v346 = vpop.xlane.xlu0 %345
        %v347 = vsel %vm255, %v313, 0.0
        %348 = vadd.xlane.f32.xlu0 %v347
        %v349 = vpop.xlane.xlu0 %348
        %v350 = vsel %vm255, %v314, 0.0
        %351 = vadd.xlane.f32.xlu0 %v350
        %v352 = vpop.xlane.xlu0 %351
        %v353 = vsel %vm255, %v315, 0.0
        %354 = vadd.xlane.f32.xlu0 %v353
        %v355 = vpop.xlane.xlu0 %354
        %v356 = vsel %vm255, %v316, 0.0
        %357 = vadd.xlane.f32.xlu0 %v356
        %v358 = vpop.xlane.xlu0 %357
        %v359 = vsel %vm255, %v317, 0.0
        %360 = vadd.xlane.f32.xlu0 %v359
        %v361 = vpop.xlane.xlu0 %360
        %v362 = vsel %vm255, %v318, 0.0
        %363 = vadd.xlane.f32.xlu0 %v362
        %v364 = vpop.xlane.xlu0 %363
        %v365 = vsel %vm255, %v319, 0.0
        %366 = vadd.xlane.f32.xlu0 %v365
        %v367 = vpop.xlane.xlu0 %366
        %v368 = vmul.f32 %v223, %v223
        %v369 = vmul.f32 %v224, %v224
        %v370 = vmul.f32 %v225, %v225
        %v371 = vmul.f32 %v226, %v226
        %v372 = vmul.f32 %v227, %v227
        %v373 = vmul.f32 %v228, %v228
        %v374 = vmul.f32 %v229, %v229
        %v375 = vmul.f32 %v230, %v230
        %v376 = vmul.f32 %v231, %v231
        %v377 = vmul.f32 %v232, %v232
        %v378 = vmul.f32 %v233, %v233
        %v379 = vmul.f32 %v234, %v234
        %v380 = vmul.f32 %v235, %v235
        %v381 = vmul.f32 %v236, %v236
        %v382 = vmul.f32 %v237, %v237
        %v383 = vmul.f32 %v238, %v238
        %v384 = vsel %vm255, %v368, 0.0
        %385 = vadd.xlane.f32.xlu0 %v384
        %v386 = vpop.xlane.xlu0 %385
        %v387 = vsel %vm255, %v369, 0.0
        %388 = vadd.xlane.f32.xlu0 %v387
        %v389 = vpop.xlane.xlu0 %388
        %v390 = vsel %vm255, %v370, 0.0
        %391 = vadd.xlane.f32.xlu0 %v390
        %v392 = vpop.xlane.xlu0 %391
        %v393 = vsel %vm255, %v371, 0.0
        %394 = vadd.xlane.f32.xlu0 %v393
        %v395 = vpop.xlane.xlu0 %394
        %v396 = vsel %vm255, %v372, 0.0
        %397 = vadd.xlane.f32.xlu0 %v396
        %v398 = vpop.xlane.xlu0 %397
        %v399 = vsel %vm255, %v373, 0.0
        %400 = vadd.xlane.f32.xlu0 %v399
        %v401 = vpop.xlane.xlu0 %400
        %v402 = vsel %vm255, %v374, 0.0
        %403 = vadd.xlane.f32.xlu0 %v402
        %v404 = vpop.xlane.xlu0 %403
        %v405 = vsel %vm255, %v375, 0.0
        %406 = vadd.xlane.f32.xlu0 %v405
        %v407 = vpop.xlane.xlu0 %406
        %v408 = vsel %vm255, %v376, 0.0
        %409 = vadd.xlane.f32.xlu0 %v408
        %v410 = vpop.xlane.xlu0 %409
        %v411 = vsel %vm255, %v377, 0.0
        %412 = vadd.xlane.f32.xlu0 %v411
        %v413 = vpop.xlane.xlu0 %412
        %v414 = vsel %vm255, %v378, 0.0
        %415 = vadd.xlane.f32.xlu0 %v414
        %v416 = vpop.xlane.xlu0 %415
        %v417 = vsel %vm255, %v379, 0.0
        %418 = vadd.xlane.f32.xlu0 %v417
        %v419 = vpop.xlane.xlu0 %418
        %v420 = vsel %vm255, %v380, 0.0
        %421 = vadd.xlane.f32.xlu0 %v420
        %v422 = vpop.xlane.xlu0 %421
        %v423 = vsel %vm255, %v381, 0.0
        %424 = vadd.xlane.f32.xlu0 %v423
        %v425 = vpop.xlane.xlu0 %424
        %v426 = vsel %vm255, %v382, 0.0
        %427 = vadd.xlane.f32.xlu0 %v426
        %v428 = vpop.xlane.xlu0 %427
        %v429 = vsel %vm255, %v383, 0.0
        %430 = vadd.xlane.f32.xlu0 %v429
        %v431 = vpop.xlane.xlu0 %430
        %v432 = vmax.f32 %v322, 1e-24
        %v433 = vmax.f32 %v325, 1e-24
        %v434 = vmax.f32 %v328, 1e-24
        %v435 = vmax.f32 %v331, 1e-24
        %v436 = vmax.f32 %v334, 1e-24
        %v437 = vmax.f32 %v337, 1e-24
        %v438 = vmax.f32 %v340, 1e-24
        %v439 = vmax.f32 %v343, 1e-24
        %v440 = vmax.f32 %v346, 1e-24
        %v441 = vmax.f32 %v349, 1e-24
        %v442 = vmax.f32 %v352, 1e-24
        %v443 = vmax.f32 %v355, 1e-24
        %v444 = vmax.f32 %v358, 1e-24
        %v445 = vmax.f32 %v361, 1e-24
        %v446 = vmax.f32 %v364, 1e-24
        %v447 = vmax.f32 %v367, 1e-24
        %v448 = vrsqrt.pop %v432
        %v449 = vmul.f32 %v448, %v432
        %v450 = vmul.f32 %v449, %v448
        %v451 = vmul.f32 0.5, %v450
        %v452 = vsub.f32 1.5, %v451
        %v453 = vmul.f32 %v448, %v452
        %vm454 = vweird.f32 %v432
        %vm455 = vweird.f32 %v448
        %vm456 = vmor %vm454, %vm455
        %v457 = vsel %vm456, %v448, %v453
        %v458 = vrsqrt.pop %v433
        %v459 = vmul.f32 %v458, %v433
        %v460 = vmul.f32 %v459, %v458
        %v461 = vmul.f32 0.5, %v460
        %v462 = vsub.f32 1.5, %v461
        %v463 = vmul.f32 %v458, %v462
        %vm464 = vweird.f32 %v433
        %vm465 = vweird.f32 %v458
        %vm466 = vmor %vm464, %vm465
        %v467 = vsel %vm466, %v458, %v463
        %v468 = vrsqrt.pop %v434
        %v469 = vmul.f32 %v468, %v434
        %v470 = vmul.f32 %v469, %v468
        %v471 = vmul.f32 0.5, %v470
        %v472 = vsub.f32 1.5, %v471
        %v473 = vmul.f32 %v468, %v472
        %vm474 = vweird.f32 %v434
        %vm475 = vweird.f32 %v468
        %vm476 = vmor %vm474, %vm475
        %v477 = vsel %vm476, %v468, %v473
        %v478 = vrsqrt.pop %v435
        %v479 = vmul.f32 %v478, %v435
        %v480 = vmul.f32 %v479, %v478
        %v481 = vmul.f32 0.5, %v480
        %v482 = vsub.f32 1.5, %v481
        %v483 = vmul.f32 %v478, %v482
        %vm484 = vweird.f32 %v435
        %vm485 = vweird.f32 %v478
        %vm486 = vmor %vm484, %vm485
        %v487 = vsel %vm486, %v478, %v483
        %v488 = vrsqrt.pop %v436
        %v489 = vmul.f32 %v488, %v436
        %v490 = vmul.f32 %v489, %v488
        %v491 = vmul.f32 0.5, %v490
        %v492 = vsub.f32 1.5, %v491
        %v493 = vmul.f32 %v488, %v492
        %vm494 = vweird.f32 %v436
        %vm495 = vweird.f32 %v488
        %vm496 = vmor %vm494, %vm495
        %v497 = vsel %vm496, %v488, %v493
        %v498 = vrsqrt.pop %v437
        %v499 = vmul.f32 %v498, %v437
        %v500 = vmul.f32 %v499, %v498
        %v501 = vmul.f32 0.5, %v500
        %v502 = vsub.f32 1.5, %v501
        %v503 = vmul.f32 %v498, %v502
        %vm504 = vweird.f32 %v437
        %vm505 = vweird.f32 %v498
        %vm506 = vmor %vm504, %vm505
        %v507 = vsel %vm506, %v498, %v503
        %v508 = vrsqrt.pop %v438
        %v509 = vmul.f32 %v508, %v438
        %v510 = vmul.f32 %v509, %v508
        %v511 = vmul.f32 0.5, %v510
        %v512 = vsub.f32 1.5, %v511
        %v513 = vmul.f32 %v508, %v512
        %vm514 = vweird.f32 %v438
        %vm515 = vweird.f32 %v508
        %vm516 = vmor %vm514, %vm515
        %v517 = vsel %vm516, %v508, %v513
        %v518 = vrsqrt.pop %v439
        %v519 = vmul.f32 %v518, %v439
        %v520 = vmul.f32 %v519, %v518
        %v521 = vmul.f32 0.5, %v520
        %v522 = vsub.f32 1.5, %v521
        %v523 = vmul.f32 %v518, %v522
        %vm524 = vweird.f32 %v439
        %vm525 = vweird.f32 %v518
        %vm526 = vmor %vm524, %vm525
        %v527 = vsel %vm526, %v518, %v523
        %v528 = vrsqrt.pop %v440
        %v529 = vmul.f32 %v528, %v440
        %v530 = vmul.f32 %v529, %v528
        %v531 = vmul.f32 0.5, %v530
        %v532 = vsub.f32 1.5, %v531
        %v533 = vmul.f32 %v528, %v532
        %vm534 = vweird.f32 %v440
        %vm535 = vweird.f32 %v528
        %vm536 = vmor %vm534, %vm535
        %v537 = vsel %vm536, %v528, %v533
        %v538 = vrsqrt.pop %v441
        %v539 = vmul.f32 %v538, %v441
        %v540 = vmul.f32 %v539, %v538
        %v541 = vmul.f32 0.5, %v540
        %v542 = vsub.f32 1.5, %v541
        %v543 = vmul.f32 %v538, %v542
        %vm544 = vweird.f32 %v441
        %vm545 = vweird.f32 %v538
        %vm546 = vmor %vm544, %vm545
        %v547 = vsel %vm546, %v538, %v543
        %v548 = vrsqrt.pop %v442
        %v549 = vmul.f32 %v548, %v442
        %v550 = vmul.f32 %v549, %v548
        %v551 = vmul.f32 0.5, %v550
        %v552 = vsub.f32 1.5, %v551
        %v553 = vmul.f32 %v548, %v552
        %vm554 = vweird.f32 %v442
        %vm555 = vweird.f32 %v548
        %vm556 = vmor %vm554, %vm555
        %v557 = vsel %vm556, %v548, %v553
        %v558 = vrsqrt.pop %v443
        %v559 = vmul.f32 %v558, %v443
        %v560 = vmul.f32 %v559, %v558
        %v561 = vmul.f32 0.5, %v560
        %v562 = vsub.f32 1.5, %v561
        %v563 = vmul.f32 %v558, %v562
        %vm564 = vweird.f32 %v443
        %vm565 = vweird.f32 %v558
        %vm566 = vmor %vm564, %vm565
        %v567 = vsel %vm566, %v558, %v563
        %v568 = vrsqrt.pop %v444
        %v569 = vmul.f32 %v568, %v444
        %v570 = vmul.f32 %v569, %v568
        %v571 = vmul.f32 0.5, %v570
        %v572 = vsub.f32 1.5, %v571
        %v573 = vmul.f32 %v568, %v572
        %vm574 = vweird.f32 %v444
        %vm575 = vweird.f32 %v568
        %vm576 = vmor %vm574, %vm575
        %v577 = vsel %vm576, %v568, %v573
        %v578 = vrsqrt.pop %v445
        %v579 = vmul.f32 %v578, %v445
        %v580 = vmul.f32 %v579, %v578
        %v581 = vmul.f32 0.5, %v580
        %v582 = vsub.f32 1.5, %v581
        %v583 = vmul.f32 %v578, %v582
        %vm584 = vweird.f32 %v445
        %vm585 = vweird.f32 %v578
        %vm586 = vmor %vm584, %vm585
        %v587 = vsel %vm586, %v578, %v583
        %v588 = vrsqrt.pop %v446
        %v589 = vmul.f32 %v588, %v446
        %v590 = vmul.f32 %v589, %v588
        %v591 = vmul.f32 0.5, %v590
        %v592 = vsub.f32 1.5, %v591
        %v593 = vmul.f32 %v588, %v592
        %vm594 = vweird.f32 %v446
        %vm595 = vweird.f32 %v588
        %vm596 = vmor %vm594, %vm595
        %v597 = vsel %vm596, %v588, %v593
        %v598 = vrsqrt.pop %v447
        %v599 = vmul.f32 %v598, %v447
        %v600 = vmul.f32 %v599, %v598
        %v601 = vmul.f32 0.5, %v600
        %v602 = vsub.f32 1.5, %v601
        %v603 = vmul.f32 %v598, %v602
        %vm604 = vweird.f32 %v447
        %vm605 = vweird.f32 %v598
        %vm606 = vmor %vm604, %vm605
        %v607 = vsel %vm606, %v598, %v603
        %v608 = vmax.f32 %v386, 1e-24
        %v609 = vmax.f32 %v389, 1e-24
        %v610 = vmax.f32 %v392, 1e-24
        %v611 = vmax.f32 %v395, 1e-24
        %v612 = vmax.f32 %v398, 1e-24
        %v613 = vmax.f32 %v401, 1e-24
        %v614 = vmax.f32 %v404, 1e-24
        %v615 = vmax.f32 %v407, 1e-24
        %v616 = vmax.f32 %v410, 1e-24
        %v617 = vmax.f32 %v413, 1e-24
        %v618 = vmax.f32 %v416, 1e-24
        %v619 = vmax.f32 %v419, 1e-24
        %v620 = vmax.f32 %v422, 1e-24
        %v621 = vmax.f32 %v425, 1e-24
        %v622 = vmax.f32 %v428, 1e-24
        %v623 = vmax.f32 %v431, 1e-24
        %v624 = vrsqrt.pop %v608
        %v625 = vmul.f32 %v624, %v608
        %v626 = vmul.f32 %v625, %v624
        %v627 = vmul.f32 0.5, %v626
        %v628 = vsub.f32 1.5, %v627
        %v629 = vmul.f32 %v624, %v628
        %vm630 = vweird.f32 %v608
        %vm631 = vweird.f32 %v624
        %vm632 = vmor %vm630, %vm631
        %v633 = vsel %vm632, %v624, %v629
        %v634 = vrsqrt.pop %v609
        %v635 = vmul.f32 %v634, %v609
        %v636 = vmul.f32 %v635, %v634
        %v637 = vmul.f32 0.5, %v636
        %v638 = vsub.f32 1.5, %v637
        %v639 = vmul.f32 %v634, %v638
        %vm640 = vweird.f32 %v609
        %vm641 = vweird.f32 %v634
        %vm642 = vmor %vm640, %vm641
        %v643 = vsel %vm642, %v634, %v639
        %v644 = vrsqrt.pop %v610
        %v645 = vmul.f32 %v644, %v610
        %v646 = vmul.f32 %v645, %v644
        %v647 = vmul.f32 0.5, %v646
        %v648 = vsub.f32 1.5, %v647
        %v649 = vmul.f32 %v644, %v648
        %vm650 = vweird.f32 %v610
        %vm651 = vweird.f32 %v644
        %vm652 = vmor %vm650, %vm651
        %v653 = vsel %vm652, %v644, %v649
        %v654 = vrsqrt.pop %v611
        %v655 = vmul.f32 %v654, %v611
        %v656 = vmul.f32 %v655, %v654
        %v657 = vmul.f32 0.5, %v656
        %v658 = vsub.f32 1.5, %v657
        %v659 = vmul.f32 %v654, %v658
        %vm660 = vweird.f32 %v611
        %vm661 = vweird.f32 %v654
        %vm662 = vmor %vm660, %vm661
        %v663 = vsel %vm662, %v654, %v659
        %v664 = vrsqrt.pop %v612
        %v665 = vmul.f32 %v664, %v612
        %v666 = vmul.f32 %v665, %v664
        %v667 = vmul.f32 0.5, %v666
        %v668 = vsub.f32 1.5, %v667
        %v669 = vmul.f32 %v664, %v668
        %vm670 = vweird.f32 %v612
        %vm671 = vweird.f32 %v664
        %vm672 = vmor %vm670, %vm671
        %v673 = vsel %vm672, %v664, %v669
        %v674 = vrsqrt.pop %v613
        %v675 = vmul.f32 %v674, %v613
        %v676 = vmul.f32 %v675, %v674
        %v677 = vmul.f32 0.5, %v676
        %v678 = vsub.f32 1.5, %v677
        %v679 = vmul.f32 %v674, %v678
        %vm680 = vweird.f32 %v613
        %vm681 = vweird.f32 %v674
        %vm682 = vmor %vm680, %vm681
        %v683 = vsel %vm682, %v674, %v679
        %v684 = vrsqrt.pop %v614
        %v685 = vmul.f32 %v684, %v614
        %v686 = vmul.f32 %v685, %v684
        %v687 = vmul.f32 0.5, %v686
        %v688 = vsub.f32 1.5, %v687
        %v689 = vmul.f32 %v684, %v688
        %vm690 = vweird.f32 %v614
        %vm691 = vweird.f32 %v684
        %vm692 = vmor %vm690, %vm691
        %v693 = vsel %vm692, %v684, %v689
        %v694 = vrsqrt.pop %v615
        %v695 = vmul.f32 %v694, %v615
        %v696 = vmul.f32 %v695, %v694
        %v697 = vmul.f32 0.5, %v696
        %v698 = vsub.f32 1.5, %v697
        %v699 = vmul.f32 %v694, %v698
        %vm700 = vweird.f32 %v615
        %vm701 = vweird.f32 %v694
        %vm702 = vmor %vm700, %vm701
        %v703 = vsel %vm702, %v694, %v699
        %v704 = vrsqrt.pop %v616
        %v705 = vmul.f32 %v704, %v616
        %v706 = vmul.f32 %v705, %v704
        %v707 = vmul.f32 0.5, %v706
        %v708 = vsub.f32 1.5, %v707
        %v709 = vmul.f32 %v704, %v708
        %vm710 = vweird.f32 %v616
        %vm711 = vweird.f32 %v704
        %vm712 = vmor %vm710, %vm711
        %v713 = vsel %vm712, %v704, %v709
        %v714 = vrsqrt.pop %v617
        %v715 = vmul.f32 %v714, %v617
        %v716 = vmul.f32 %v715, %v714
        %v717 = vmul.f32 0.5, %v716
        %v718 = vsub.f32 1.5, %v717
        %v719 = vmul.f32 %v714, %v718
        %vm720 = vweird.f32 %v617
        %vm721 = vweird.f32 %v714
        %vm722 = vmor %vm720, %vm721
        %v723 = vsel %vm722, %v714, %v719
        %v724 = vrsqrt.pop %v618
        %v725 = vmul.f32 %v724, %v618
        %v726 = vmul.f32 %v725, %v724
        %v727 = vmul.f32 0.5, %v726
        %v728 = vsub.f32 1.5, %v727
        %v729 = vmul.f32 %v724, %v728
        %vm730 = vweird.f32 %v618
        %vm731 = vweird.f32 %v724
        %vm732 = vmor %vm730, %vm731
        %v733 = vsel %vm732, %v724, %v729
        %v734 = vrsqrt.pop %v619
        %v735 = vmul.f32 %v734, %v619
        %v736 = vmul.f32 %v735, %v734
        %v737 = vmul.f32 0.5, %v736
        %v738 = vsub.f32 1.5, %v737
        %v739 = vmul.f32 %v734, %v738
        %vm740 = vweird.f32 %v619
        %vm741 = vweird.f32 %v734
        %vm742 = vmor %vm740, %vm741
        %v743 = vsel %vm742, %v734, %v739
        %v744 = vrsqrt.pop %v620
        %v745 = vmul.f32 %v744, %v620
        %v746 = vmul.f32 %v745, %v744
        %v747 = vmul.f32 0.5, %v746
        %v748 = vsub.f32 1.5, %v747
        %v749 = vmul.f32 %v744, %v748
        %vm750 = vweird.f32 %v620
        %vm751 = vweird.f32 %v744
        %vm752 = vmor %vm750, %vm751
        %v753 = vsel %vm752, %v744, %v749
        %v754 = vrsqrt.pop %v621
        %v755 = vmul.f32 %v754, %v621
        %v756 = vmul.f32 %v755, %v754
        %v757 = vmul.f32 0.5, %v756
        %v758 = vsub.f32 1.5, %v757
        %v759 = vmul.f32 %v754, %v758
        %vm760 = vweird.f32 %v621
        %vm761 = vweird.f32 %v754
        %vm762 = vmor %vm760, %vm761
        %v763 = vsel %vm762, %v754, %v759
        %v764 = vrsqrt.pop %v622
        %v765 = vmul.f32 %v764, %v622
        %v766 = vmul.f32 %v765, %v764
        %v767 = vmul.f32 0.5, %v766
        %v768 = vsub.f32 1.5, %v767
        %v769 = vmul.f32 %v764, %v768
        %vm770 = vweird.f32 %v622
        %vm771 = vweird.f32 %v764
        %vm772 = vmor %vm770, %vm771
        %v773 = vsel %vm772, %v764, %v769
        %v774 = vrsqrt.pop %v623
        %v775 = vmul.f32 %v774, %v623
        %v776 = vmul.f32 %v775, %v774
        %v777 = vmul.f32 0.5, %v776
        %v778 = vsub.f32 1.5, %v777
        %v779 = vmul.f32 %v774, %v778
        %vm780 = vweird.f32 %v623
        %vm781 = vweird.f32 %v774
        %vm782 = vmor %vm780, %vm781
        %v783 = vsel %vm782, %v774, %v779
        %v784 = vmul.f32 %v258, %v457
        %v785 = vmul.f32 %v261, %v467
        %v786 = vmul.f32 %v264, %v477
        %v787 = vmul.f32 %v267, %v487
        %v788 = vmul.f32 %v270, %v497
        %v789 = vmul.f32 %v273, %v507
        %v790 = vmul.f32 %v276, %v517
        %v791 = vmul.f32 %v279, %v527
        %v792 = vmul.f32 %v282, %v537
        %v793 = vmul.f32 %v285, %v547
        %v794 = vmul.f32 %v288, %v557
        %v795 = vmul.f32 %v291, %v567
        %v796 = vmul.f32 %v294, %v577
        %v797 = vmul.f32 %v297, %v587
        %v798 = vmul.f32 %v300, %v597
        %v799 = vmul.f32 %v303, %v607
        %v800 = vmul.f32 %v784, %v633
        %v801 = vmul.f32 %v785, %v643
        %v802 = vmul.f32 %v786, %v653
        %v803 = vmul.f32 %v787, %v663
        %v804 = vmul.f32 %v788, %v673
        %v805 = vmul.f32 %v789, %v683
        %v806 = vmul.f32 %v790, %v693
        %v807 = vmul.f32 %v791, %v703
        %v808 = vmul.f32 %v792, %v713
        %v809 = vmul.f32 %v793, %v723
        %v810 = vmul.f32 %v794, %v733
        %v811 = vmul.f32 %v795, %v743
        %v812 = vmul.f32 %v796, %v753
        %v813 = vmul.f32 %v797, %v763
        %v814 = vmul.f32 %v798, %v773
        %v815 = vmul.f32 %v799, %v783
        %vm816 = vcmask 7168
        %817 = vst.msk [vmem:[%s173] sm:$0xff] %vm816, %v800
        %818 = vst.msk [vmem:[%s173 + $0x8] sm:$0xff] %vm816, %v801
        %819 = vst.msk [vmem:[%s173 + $0x10] sm:$0xff] %vm816, %v802
        %820 = vst.msk [vmem:[%s173 + $0x18] sm:$0xff] %vm816, %v803
        %821 = vst.msk [vmem:[%s173 + $0x20] sm:$0xff] %vm816, %v804
        %822 = vst.msk [vmem:[%s173 + $0x28] sm:$0xff] %vm816, %v805
        %823 = vst.msk [vmem:[%s173 + $0x30] sm:$0xff] %vm816, %v806
        %824 = vst.msk [vmem:[%s173 + $0x38] sm:$0xff] %vm816, %v807
        %825 = vst.msk [vmem:[%s173 + $0x40] sm:$0xff] %vm816, %v808
        %826 = vst.msk [vmem:[%s173 + $0x48] sm:$0xff] %vm816, %v809
        %827 = vst.msk [vmem:[%s173 + $0x50] sm:$0xff] %vm816, %v810
        %828 = vst.msk [vmem:[%s173 + $0x58] sm:$0xff] %vm816, %v811
        %829 = vst.msk [vmem:[%s173 + $0x60] sm:$0xff] %vm816, %v812
        %830 = vst.msk [vmem:[%s173 + $0x68] sm:$0xff] %vm816, %v813
        %831 = vst.msk [vmem:[%s173 + $0x70] sm:$0xff] %vm816, %v814
        %832 = vst.msk [vmem:[%s173 + $0x78] sm:$0xff] %vm816, %v815
        %s833 = sand.u32 %s73, 1
        %s834 = sand.u32 %s73, 1
        %s835 = smul.addr %s834, 128
        %s836 = scalar_lea.vmem [#allocation2], %s835
        // Predicated region
        $region29: #{av_similarity.1} parent=27 // pred_check
          %p837 = pneg %p83
        $region30: #{av_similarity.1} parent=27 // pred_check_branch
          %839 = sbr.rel (%p837) target = $region32
        $region31: #{av_similarity.1} parent=27 // pred_region
          %s840 = smul.u32 16, %s13
          %s841 = ssub.s32 25, %s840
          %p842 = scmp.lt.s32.totalorder %s841, 16
          %s843 = scalar_select %p842, %s841, 16
          %s844 = smul.u32 8, %s843
          %p845 = scmp.ne.s32.totalorder 0, %s844
          %s846 = smul.addr %s840, 8
          %s847 = scalar_lea.vmem %s2, %s846
          // Predicated region
          $region33: #{av_similarity.1} parent=31 // pred_check
            %p848 = pneg %p845
          $region34: #{av_similarity.1} parent=31 // pred_check_branch
            %850 = sbr.rel (%p848) target = $region36
          $region35: #{av_similarity.1} parent=31 // pred_region
            // Predicated region
            $region37: #{av_similarity.1} parent=35 // pred_check
              _
            $region38: #{av_similarity.1} parent=35 // pred_check_branch
              %852 = sbr.rel (0) target = $region40
            $region39: #{av_similarity.1} parent=35 // pred_region
              // Predicated region
              $region59: #{av_similarity.1} parent=39 // pred_check
                _
              $region60: #{av_similarity.1} parent=39 // pred_check_branch
                %932 = sbr.rel (0) target = $region62
              $region61: #{av_similarity.1} parent=39 // pred_region
                %s933 = sshrl.u32 %s843, 4
                // While loop
                $region63: #{av_similarity.1} parent=61 // loop_pre_header
                  _
                $region64: #{av_similarity.1} parent=61 // loop_header
                  %s935 = sphi 0, %s937
                  %p936 = scmp.ge.s32.totalorder %s935, %s933
                  %s940 = sphi 0, %s977
                  %s941 = sphi %s836, %s980
                  %s942 = sphi %s847, %s981
                $region65: #{av_similarity.1} parent=61 // loop_header_branch
                  %939 = sbr.rel (%p936) target = $region69
                $region66: #{av_similarity.1} parent=61 // loop_body
                  %v943 = vld [vmem:[%s941] sm:$0xff]
                  %944 = vst [vmem:[%s942] sm:$0xff] %v943
                  %v945 = vld [vmem:[%s941 + $0x8] sm:$0xff]
                  %946 = vst [vmem:[%s942 + $0x8] sm:$0xff] %v945
                  %v947 = vld [vmem:[%s941 + $0x10] sm:$0xff]
                  %948 = vst [vmem:[%s942 + $0x10] sm:$0xff] %v947
                  %v949 = vld [vmem:[%s941 + $0x18] sm:$0xff]
                  %950 = vst [vmem:[%s942 + $0x18] sm:$0xff] %v949
                  %v951 = vld [vmem:[%s941 + $0x20] sm:$0xff]
                  %952 = vst [vmem:[%s942 + $0x20] sm:$0xff] %v951
                  %v953 = vld [vmem:[%s941 + $0x28] sm:$0xff]
                  %954 = vst [vmem:[%s942 + $0x28] sm:$0xff] %v953
                  %v955 = vld [vmem:[%s941 + $0x30] sm:$0xff]
                  %956 = vst [vmem:[%s942 + $0x30] sm:$0xff] %v955
                  %v957 = vld [vmem:[%s941 + $0x38] sm:$0xff]
                  %958 = vst [vmem:[%s942 + $0x38] sm:$0xff] %v957
                  %v959 = vld [vmem:[%s941 + $0x40] sm:$0xff]
                  %960 = vst [vmem:[%s942 + $0x40] sm:$0xff] %v959
                  %v961 = vld [vmem:[%s941 + $0x48] sm:$0xff]
                  %962 = vst [vmem:[%s942 + $0x48] sm:$0xff] %v961
                  %v963 = vld [vmem:[%s941 + $0x50] sm:$0xff]
                  %964 = vst [vmem:[%s942 + $0x50] sm:$0xff] %v963
                  %v965 = vld [vmem:[%s941 + $0x58] sm:$0xff]
                  %966 = vst [vmem:[%s942 + $0x58] sm:$0xff] %v965
                  %v967 = vld [vmem:[%s941 + $0x60] sm:$0xff]
                  %968 = vst [vmem:[%s942 + $0x60] sm:$0xff] %v967
                  %v969 = vld [vmem:[%s941 + $0x68] sm:$0xff]
                  %970 = vst [vmem:[%s942 + $0x68] sm:$0xff] %v969
                  %v971 = vld [vmem:[%s941 + $0x70] sm:$0xff]
                  %972 = vst [vmem:[%s942 + $0x70] sm:$0xff] %v971
                  %v973 = vld [vmem:[%s941 + $0x78] sm:$0xff]
                  %974 = vst [vmem:[%s942 + $0x78] sm:$0xff] %v973
                  %s975 = sadd.s32 1, %s940
                  %p976 = scmp.ge.s32.totalorder %s975, %s933
                  %s977 = scalar_select %p976, 0, %s975
                  %s978 = smul.u32 %s977, 128
                  %s979 = smul.u32 %s977, 128
                  %s980 = scalar_lea.vmem %s836, %s978 [#allocation2]
                  %s981 = scalar_lea.vmem %s847, %s979
                $region67: #{av_similarity.1} parent=61 // loop_footer
                  %s937 = sadd.s32 %s935, 1
                $region68: #{av_similarity.1} parent=61 // loop_footer_branch
                  %934 = sbr.rel target = $region64
                $region69: #{av_similarity.1} parent=61 // loop_exit
                  _
                %s982 = sshrl.u32 %s843, 4
                %s983 = sand.u32 %s843, 15
                %s984 = smul.u32 %s982, 16
                %s985 = smul.u32 8, %s984
                %s986 = scalar_lea.vmem %s836, %s985 [#allocation2]
                %s987 = smul.u32 8, %s984
                %s988 = scalar_lea.vmem %s847, %s987
                // While loop
                $region70: #{av_similarity.1} parent=61 // loop_pre_header
                  _
                $region71: #{av_similarity.1} parent=61 // loop_header
                  %s990 = sphi 0, %s992
                  %p991 = scmp.ge.s32.totalorder %s990, %s983
                  %s995 = sphi 0, %s1002
                  %s996 = sphi %s986, %s1005
                  %s997 = sphi %s988, %s1006
                $region72: #{av_similarity.1} parent=61 // loop_header_branch
                  %994 = sbr.rel (%p991) target = $region76
                $region73: #{av_similarity.1} parent=61 // loop_body
                  %v998 = vld [vmem:[%s996] sm:$0xff]
                  %999 = vst [vmem:[%s997] sm:$0xff] %v998
                  %s1000 = sadd.s32 1, %s995
                  %p1001 = scmp.ge.s32.totalorder %s1000, %s983
                  %s1002 = scalar_select %p1001, 0, %s1000
                  %s1003 = smul.u32 %s1002, 8
                  %s1004 = smul.u32 %s1002, 8
                  %s1005 = scalar_lea.vmem %s986, %s1003 [#allocation2]
                  %s1006 = scalar_lea.vmem %s988, %s1004
                $region74: #{av_similarity.1} parent=61 // loop_footer
                  %s992 = sadd.s32 %s990, 1
                $region75: #{av_similarity.1} parent=61 // loop_footer_branch
                  %989 = sbr.rel target = $region71
                $region76: #{av_similarity.1} parent=61 // loop_exit
                  _
              $region62: #{av_similarity.1} parent=39 // pred_fallthru
                _
              // Predicated region
              $region77: #{av_similarity.1} parent=39 // pred_check
                _
              $region78: #{av_similarity.1} parent=39 // pred_check_branch
                %1008 = sbr.rel target = $region80
              $region79: #{av_similarity.1} parent=39 // pred_region
                _
              $region80: #{av_similarity.1} parent=39 // pred_fallthru
                _
            $region40: #{av_similarity.1} parent=35 // pred_fallthru
              _
            // Predicated region
            $region41: #{av_similarity.1} parent=35 // pred_check
              _
            $region42: #{av_similarity.1} parent=35 // pred_check_branch
              %854 = sbr.rel target = $region44
            $region43: #{av_similarity.1} parent=35 // pred_region
              %s856 = ssub.s32 256, 1
              %s857 = sshrl.u32 %s843, 4
              // While loop
              $region45: #{av_similarity.1} parent=43 // loop_pre_header
                _
              $region46: #{av_similarity.1} parent=43 // loop_header
                %s859 = sphi 0, %s861
                %p860 = scmp.ge.s32.totalorder %s859, %s857
                %s864 = sphi 0, %s901
                %s865 = sphi %s836, %s904
                %s866 = sphi %s847, %s905
              $region47: #{av_similarity.1} parent=43 // loop_header_branch
                %863 = sbr.rel (%p860) target = $region51
              $region48: #{av_similarity.1} parent=43 // loop_body
                %v867 = vld [vmem:[%s865] sm:%s856]
                %868 = vst [vmem:[%s866] sm:%s856] %v867
                %v869 = vld [vmem:[%s865 + $0x8] sm:%s856]
                %870 = vst [vmem:[%s866 + $0x8] sm:%s856] %v869
                %v871 = vld [vmem:[%s865 + $0x10] sm:%s856]
                %872 = vst [vmem:[%s866 + $0x10] sm:%s856] %v871
                %v873 = vld [vmem:[%s865 + $0x18] sm:%s856]
                %874 = vst [vmem:[%s866 + $0x18] sm:%s856] %v873
                %v875 = vld [vmem:[%s865 + $0x20] sm:%s856]
                %876 = vst [vmem:[%s866 + $0x20] sm:%s856] %v875
                %v877 = vld [vmem:[%s865 + $0x28] sm:%s856]
                %878 = vst [vmem:[%s866 + $0x28] sm:%s856] %v877
                %v879 = vld [vmem:[%s865 + $0x30] sm:%s856]
                %880 = vst [vmem:[%s866 + $0x30] sm:%s856] %v879
                %v881 = vld [vmem:[%s865 + $0x38] sm:%s856]
                %882 = vst [vmem:[%s866 + $0x38] sm:%s856] %v881
                %v883 = vld [vmem:[%s865 + $0x40] sm:%s856]
                %884 = vst [vmem:[%s866 + $0x40] sm:%s856] %v883
                %v885 = vld [vmem:[%s865 + $0x48] sm:%s856]
                %886 = vst [vmem:[%s866 + $0x48] sm:%s856] %v885
                %v887 = vld [vmem:[%s865 + $0x50] sm:%s856]
                %888 = vst [vmem:[%s866 + $0x50] sm:%s856] %v887
                %v889 = vld [vmem:[%s865 + $0x58] sm:%s856]
                %890 = vst [vmem:[%s866 + $0x58] sm:%s856] %v889
                %v891 = vld [vmem:[%s865 + $0x60] sm:%s856]
                %892 = vst [vmem:[%s866 + $0x60] sm:%s856] %v891
                %v893 = vld [vmem:[%s865 + $0x68] sm:%s856]
                %894 = vst [vmem:[%s866 + $0x68] sm:%s856] %v893
                %v895 = vld [vmem:[%s865 + $0x70] sm:%s856]
                %896 = vst [vmem:[%s866 + $0x70] sm:%s856] %v895
                %v897 = vld [vmem:[%s865 + $0x78] sm:%s856]
                %898 = vst [vmem:[%s866 + $0x78] sm:%s856] %v897
                %s899 = sadd.s32 1, %s864
                %p900 = scmp.ge.s32.totalorder %s899, %s857
                %s901 = scalar_select %p900, 0, %s899
                %s902 = smul.u32 %s901, 128
                %s903 = smul.u32 %s901, 128
                %s904 = scalar_lea.vmem %s836, %s902 [#allocation2]
                %s905 = scalar_lea.vmem %s847, %s903
              $region49: #{av_similarity.1} parent=43 // loop_footer
                %s861 = sadd.s32 %s859, 1
              $region50: #{av_similarity.1} parent=43 // loop_footer_branch
                %858 = sbr.rel target = $region46
              $region51: #{av_similarity.1} parent=43 // loop_exit
                _
              %s906 = sshrl.u32 %s843, 4
              %s907 = sand.u32 %s843, 15
              %s908 = smul.u32 %s906, 16
              %s909 = smul.u32 8, %s908
              %s910 = scalar_lea.vmem %s836, %s909 [#allocation2]
              %s911 = smul.u32 8, %s908
              %s912 = scalar_lea.vmem %s847, %s911
              // While loop
              $region52: #{av_similarity.1} parent=43 // loop_pre_header
                _
              $region53: #{av_similarity.1} parent=43 // loop_header
                %s914 = sphi 0, %s916
                %p915 = scmp.ge.s32.totalorder %s914, %s907
                %s919 = sphi 0, %s926
                %s920 = sphi %s910, %s929
                %s921 = sphi %s912, %s930
              $region54: #{av_similarity.1} parent=43 // loop_header_branch
                %918 = sbr.rel (%p915) target = $region58
              $region55: #{av_similarity.1} parent=43 // loop_body
                %v922 = vld [vmem:[%s920] sm:%s856]
                %923 = vst [vmem:[%s921] sm:%s856] %v922
                %s924 = sadd.s32 1, %s919
                %p925 = scmp.ge.s32.totalorder %s924, %s907
                %s926 = scalar_select %p925, 0, %s924
                %s927 = smul.u32 %s926, 8
                %s928 = smul.u32 %s926, 8
                %s929 = scalar_lea.vmem %s910, %s927 [#allocation2]
                %s930 = scalar_lea.vmem %s912, %s928
              $region56: #{av_similarity.1} parent=43 // loop_footer
                %s916 = sadd.s32 %s914, 1
              $region57: #{av_similarity.1} parent=43 // loop_footer_branch
                %913 = sbr.rel target = $region53
              $region58: #{av_similarity.1} parent=43 // loop_exit
                _
            $region44: #{av_similarity.1} parent=35 // pred_fallthru
              _
          $region36: #{av_similarity.1} parent=31 // pred_fallthru
            _
          %1009 = vnop
        $region32: #{av_similarity.1} parent=27 // pred_fallthru
          _
      $region28: #{av_similarity.1} parent=5 // pred_fallthru
        _
      %p1010 = scmp.le.s32.totalorder 2, %s8
      // Predicated region
      $region81: #{av_similarity.1} parent=5 // pred_check
        %p1011 = pneg %p1010
      $region82: #{av_similarity.1} parent=5 // pred_check_branch
        %1013 = sbr.rel (%p1011) target = $region84
      $region83: #{av_similarity.1} parent=5 // pred_region
        %s1014 = ssub.s32 %s8, 2
        // Predicated region
        $region85: #{av_similarity.1} parent=83 // pred_check
          %p1015 = pneg %p89
        $region86: #{av_similarity.1} parent=83 // pred_check_branch
          %1017 = sbr.rel (%p1015) target = $region88
        $region87: #{av_similarity.1} parent=83 // pred_region
          %s1018 = sand.u32 %s74, 1
          %s1019 = sand.u32 %s74, 1
          %s1020 = smul.addr %s1019, 128
          %s1021 = scalar_lea.vmem [#allocation2], %s1020
        $region88: #{av_similarity.1} parent=83 // pred_fallthru
          _
      $region84: #{av_similarity.1} parent=5 // pred_fallthru
        _
    $region6: #{av_similarity.1} parent=1 // loop_footer
      %s12 = sadd.s32 1, %s8
    $region7: #{av_similarity.1} parent=1 // loop_footer_branch
      %7 = sbr.rel target = $region3
    $region8: #{av_similarity.1} parent=1 // loop_exit
      _

</llo_original>
